<compile_context>
chip_gen: v7x
topology: tpu7x:2x2x1
jax: 0.10.0
libtpu: 0.0.40
codegen_flags: <defaults>
</compile_context>

<pallas_src>
import math

import jax
import jax.numpy as jnp
from jax import lax
from jax.experimental import pallas as pl
from jax.experimental.pallas import tpu as pltpu

# ---- katz_pool hyper-parameters (args.K, args.alpha, ratio) ----
K = 3          # number of Katz propagation steps
ALPHA = 0.1    # Katz damping
RATIO = 0.5    # pooling ratio

LANE = 128           # TPU lane width
ROWS_PER_STEP = 32   # permuted rows gathered per grid step in kernel 3


def _round_up(v, m):
    return (v + m - 1) // m * m


def _pick_tile(n_pad, cap=1024):
    for t in (1024, 512, 256, 128):
        if t <= cap and n_pad % t == 0:
            return t
    return 128


def _vmem_limit_bytes():
    # Per-generation scoped-VMEM limit with headroom (v5e/v6e 128 MiB -> 96 MiB,
    # v7x 64 MiB -> 48 MiB).  Falls back to a conservative 48 MiB if the query fails.
    cap = 64 * 1024 * 1024
    try:
        info = pltpu.get_tpu_info()
        cap = int(getattr(info, "vmem_capacity_bytes", cap))
    except Exception:
        pass
    cap = max(cap, 32 * 1024 * 1024)
    return int(min(96 * 1024 * 1024, cap * 3 // 4))


# ------------------------------------------------------------------
# Kernel 1: lane-dense linear score  s0 = w . x^T + b  (channel axis
# contracted in-kernel; x is read in natural layout, no wrapper transpose)
# ------------------------------------------------------------------
def _linear_kernel(w_ref, x_ref, b_ref, out_ref):
    out_ref[...] = lax.dot_general(
        w_ref[...], x_ref[...],
        dimension_numbers=(((1,), (1,)), ((), ())),       # contract channel axes
        preferred_element_type=jnp.float32) + b_ref[0]


def linear_score(x_pad, w_row, b_vec):
    N_pad, C_pad = x_pad.shape
    tn = _pick_tile(N_pad)
    return pl.pallas_call(
        _linear_kernel,
        out_shape=jax.ShapeDtypeStruct((1, N_pad), jnp.float32),
        grid=(N_pad // tn,),
        in_specs=[
            pl.BlockSpec((1, C_pad), lambda j: (0, 0)),           # weights, resident
            pl.BlockSpec((tn, C_pad), lambda j: (j, 0)),          # natural-layout x tile
            pl.BlockSpec(memory_space=pltpu.MemorySpace.SMEM),    # bias scalar
        ],
        out_specs=pl.BlockSpec((1, tn), lambda j: (0, j)),        # lane-dense score
        compiler_params=pltpu.CompilerParams(
            dimension_semantics=("parallel",),
            vmem_limit_bytes=_vmem_limit_bytes()),
    )(w_row, x_pad, b_vec)


# ------------------------------------------------------------------
# Kernel 2: Katz propagation  h <- alpha * h @ A_T + s0   (K steps)
# ------------------------------------------------------------------
def _katz_resident_kernel(s0_ref, a_ref, score_ref, g_ref):
    # adjT resident in VMEM (fetched from HBM once as bf16); upcast to f32 once,
    # amortized over all K steps -> no per-step converts, exact f32 propagation.
    a = a_ref[...].astype(jnp.float32)
    s0 = s0_ref[...]
    h = s0
    for _ in range(K):                                   # K is small and static
        h = ALPHA * jnp.dot(h, a, preferred_element_type=jnp.float32) + s0
    score_ref[...] = h
    g_ref[...] = jnp.tanh(h)


def _katz_resident(s0, adjT, vmem_limit):
    N_pad = s0.shape[1]
    vspec = pl.BlockSpec(memory_space=pltpu.MemorySpace.VMEM)
    return pl.pallas_call(
        _katz_resident_kernel,
        out_shape=(jax.ShapeDtypeStruct((1, N_pad), jnp.float32),   # score
                   jax.ShapeDtypeStruct((1, N_pad), jnp.float32)),  # tanh(score)
        in_specs=[vspec, vspec],
        out_specs=(vspec, vspec),
        compiler_params=pltpu.CompilerParams(vmem_limit_bytes=vmem_limit),
    )(s0, adjT)


def _make_katz_stream_kernel(tk, tn):
    def kernel(s0_ref, a_ref, score_ref, g_ref, hsrc_ref, hdst_ref, acc_ref):
        kk = pl.program_id(0)           # Katz step
        d = pl.program_id(1)            # dst (output lane) tile
        s = pl.program_id(2)            # src (contraction) tile
        n_steps = pl.num_programs(0)
        n_src = pl.num_programs(2)

        # Start of a Katz step: refresh the resident source row.
        @pl.when((d == 0) & (s == 0))
        def _():
            @pl.when(kk == 0)
            def _():
                hsrc_ref[...] = s0_ref[...]

            @pl.when(kk > 0)
            def _():
                hsrc_ref[...] = hdst_ref[...]

        src_off = pl.multiple_of(s * tk, tk)
        # Downcast only the (1, tk) h slice to bf16; the streamed A_T tile is used
        # as-is (no full-tile f32 upcast in the hot loop).
        h_src = hsrc_ref[:, pl.ds(src_off, tk)].astype(jnp.bfloat16)
        part = jnp.dot(h_src, a_ref[...], preferred_element_type=jnp.float32)

        @pl.when(s == 0)
        def _():
            acc_ref[...] = part

        @pl.when(s > 0)
        def _():
            acc_ref[...] = acc_ref[...] + part

        # End of contraction for this dst tile (merged epilogue: h_new computed once).
        @pl.when(s == n_src - 1)
        def _():
            dst_off = pl.multiple_of(d * tn, tn)
            h_new = ALPHA * acc_ref[...] + s0_ref[:, pl.ds(dst_off, tn)]

            @pl.when(kk < n_steps - 1)          # skip the dead write on the last step
            def _():
                hdst_ref[:, pl.ds(dst_off, tn)] = h_new

            @pl.when(kk == n_steps - 1)         # emit score and tanh(score)
            def _():
                score_ref[:, pl.ds(dst_off, tn)] = h_new
                g_ref[:, pl.ds(dst_off, tn)] = jnp.tanh(h_new)

    return kernel


def _katz_stream(s0, adjT, vmem_limit):
    N_pad = s0.shape[1]
    t = _pick_tile(N_pad)
    tk = tn = t
    return pl.pallas_call(
        _make_katz_stream_kernel(tk, tn),
        out_shape=(jax.ShapeDtypeStruct((1, N_pad), jnp.float32),
                   jax.ShapeDtypeStruct((1, N_pad), jnp.float32)),
        grid=(K, N_pad // tn, N_pad // tk),
        in_specs=[
            pl.BlockSpec((1, N_pad), lambda kk, d, s: (0, 0)),    # s0, resident
            pl.BlockSpec((tk, tn), lambda kk, d, s: (s, d)),      # bf16 A_T tile
        ],
        out_specs=(
            pl.BlockSpec((1, N_pad), lambda kk, d, s: (0, 0)),
            pl.BlockSpec((1, N_pad), lambda kk, d, s: (0, 0)),
        ),
        scratch_shapes=[
            pltpu.VMEM((1, N_pad), jnp.float32),   # h_k     (read side)
            pltpu.VMEM((1, N_pad), jnp.float32),   # h_{k+1} (write side)
            pltpu.VMEM((1, tn), jnp.float32),      # per-dst-tile accumulator
        ],
        compiler_params=pltpu.CompilerParams(
            dimension_semantics=("arbitrary", "arbitrary", "arbitrary"),
            vmem_limit_bytes=vmem_limit),
    )(s0, adjT)


def katz_propagate(s0, adjT, *, force_stream=False):
    # TODO(synk): v7x dual-TensorCore split of the Katz stage (shared h via
    # VMEM_SHARED/CMEM + core_barrier) is not implemented; it runs on one TC.
    N_pad = s0.shape[1]
    vmem_limit = _vmem_limit_bytes()
    resident_bytes = 8 * N_pad * N_pad + (8 << 20)   # bf16 buffer + f32 copy + slack
    if (not force_stream) and resident_bytes <= vmem_limit:
        return _katz_resident(s0, adjT, vmem_limit)
    return _katz_stream(s0, adjT, vmem_limit)


# ------------------------------------------------------------------
# Kernel 3: x[perm] * tanh(score[perm]), 32 permuted rows per grid step
# via manual row-gather DMAs into a (32, C_pad) VMEM scratch
# ------------------------------------------------------------------
def _gather_scale_kernel(perm_ref, g_ref, x_hbm, out_ref, buf, sems):
    i = pl.program_id(0)
    base = i * ROWS_PER_STEP

    # Issue all row-gather DMAs for this block (all in flight concurrently).
    @pl.loop(0, ROWS_PER_STEP)
    def _(j):
        row = perm_ref[base + j]
        pltpu.make_async_copy(x_hbm.at[pl.ds(row, 1), :],
                              buf.at[pl.ds(j, 1), :],
                              sems.at[j]).start()

    @pl.loop(0, ROWS_PER_STEP)
    def _(j):
        pltpu.make_async_copy(x_hbm.at[pl.ds(0, 1), :],
                              buf.at[pl.ds(j, 1), :],
                              sems.at[j]).wait()

    # Scale each gathered row by tanh(score)[perm] and store one dense block
    # directly in the output dtype (no concatenate, no extra wrapper cast).
    out_ref[...] = (buf[...] * g_ref[...]).astype(out_ref.dtype)


def gather_and_scale(x_pad, perm_pad, gperm_col, out_dtype):
    N_pad, C_pad = x_pad.shape
    k_pad = perm_pad.shape[0]
    nb = k_pad // ROWS_PER_STEP

    grid_spec = pltpu.PrefetchScalarGridSpec(
        num_scalar_prefetch=1,                                     # perm -> SMEM
        grid=(nb,),
        in_specs=[
            pl.BlockSpec((ROWS_PER_STEP, 1), lambda i, perm: (i, 0)),  # tanh(score)[perm]
            pl.BlockSpec(memory_space=pl.ANY),                          # x rows stay in HBM
        ],
        out_specs=pl.BlockSpec((ROWS_PER_STEP, C_pad), lambda i, perm: (i, 0)),
        scratch_shapes=[
            pltpu.VMEM((ROWS_PER_STEP, C_pad), x_pad.dtype),
            pltpu.SemaphoreType.DMA((ROWS_PER_STEP,)),
        ],
    )
    return pl.pallas_call(
        _gather_scale_kernel,
        out_shape=jax.ShapeDtypeStruct((k_pad, C_pad), out_dtype),
        grid_spec=grid_spec,
        compiler_params=pltpu.CompilerParams(
            dimension_semantics=("parallel",),
            vmem_limit_bytes=_vmem_limit_bytes()),
    )(perm_pad, gperm_col, x_pad)


# ------------------------------------------------------------------
# Plain-JAX glue (adjacency build, top-k, edge filtering)
# ------------------------------------------------------------------
def build_dense_adjT(edge_index, n_pad):
    # adjT[src, dst] = #edges src->dst, scattered directly into bf16 (no N^2 f32
    # intermediate).  NOTE: bf16 counts are exact only up to 256 parallel edges.
    src, dst = edge_index[0], edge_index[1]
    return jnp.zeros((n_pad, n_pad), jnp.bfloat16).at[src, dst].add(1.0)


def topk_perm(score, ratio, num_nodes):
    # TODO(synk): only the single-graph case (batch == all zeros) is handled;
    # PyG's per-graph segmented topk is not implemented here.
    k = int(math.ceil(ratio * num_nodes))
    _, perm = lax.top_k(score, k)           # descending order, like PyG topk
    return perm.astype(jnp.int32)


def filter_adj(edge_index, edge_attr, perm, num_nodes):
    # TODO(synk): jnp.nonzero has a data-dependent output shape (eager/host-sync);
    # a jit-friendly variant would return a masked, padded edge list instead.
    k = perm.shape[0]
    mapping = (-jnp.ones((num_nodes,), jnp.int32)
               .at[perm].set(jnp.arange(k, dtype=jnp.int32)))
    new_src = mapping[edge_index[0]]
    new_dst = mapping[edge_index[1]]
    mask = (new_src >= 0) & (new_dst >= 0)
    idx = jnp.nonzero(mask)[0]
    new_edge_index = jnp.stack([new_src[idx], new_dst[idx]])
    new_edge_attr = None if edge_attr is None else edge_attr[idx]
    return new_edge_index, new_edge_attr


def katz_pool_forward(x, edge_index, w, b, edge_attr=None, batch=None, *,
                      force_stream=False):
    N, C = x.shape
    if batch is None:
        batch = jnp.zeros((N,), jnp.int32)

    # Lane-dense padding: nodes and channels to multiples of 128.
    N_pad = _round_up(max(N, LANE), LANE)
    C_pad = _round_up(max(C, LANE), LANE)
    x_pad = jnp.zeros((N_pad, C_pad), jnp.float32).at[:N, :C].set(
        x.astype(jnp.float32))
    w_row = jnp.zeros((1, C_pad), jnp.float32).at[0, :C].set(
        w[:, 0].astype(jnp.float32))
    b_vec = b.reshape(-1)[:1].astype(jnp.float32)          # (1,) scalar for SMEM

    adjT = build_dense_adjT(edge_index, N_pad)

    s0 = linear_score(x_pad, w_row, b_vec)                  # (1, N_pad)   kernel 1
    # Zero padded-node scores so the bias never propagates through the padded region.
    valid = (jnp.arange(N_pad) < N)[None, :]
    s0 = jnp.where(valid, s0, 0.0)

    score_row, g_row = katz_propagate(s0, adjT, force_stream=force_stream)  # kernel 2

    score = score_row[0, :N]                                # .squeeze()
    perm = topk_perm(score, RATIO, N)
    k = perm.shape[0]

    # Pad perm to whole gather blocks (extra rows are zero-scaled and sliced off).
    k_pad = _round_up(max(k, ROWS_PER_STEP), ROWS_PER_STEP)
    perm_pad = jnp.zeros((k_pad,), jnp.int32).at[:k].set(perm)
    gperm_col = jnp.zeros((k_pad, 1), jnp.float32).at[:k, 0].set(g_row[0, perm])

    x_out_pad = gather_and_scale(x_pad, perm_pad, gperm_col, x.dtype)       # kernel 3
    x_out = x_out_pad[:k, :C]

    batch_out = batch[perm]
    edge_index_out, edge_attr_out = filter_adj(edge_index, edge_attr, perm, N)
    return x_out, edge_index_out, edge_attr_out, batch_out, perm


# ------------------------------------------------------------------
# Pure-JAX reference score (high precision) for the correctness check
# ------------------------------------------------------------------
def _reference_score(x, edge_index, w, b):
    N = x.shape[0]
    adj = jnp.zeros((N, N), jnp.float32).at[edge_index[1], edge_index[0]].add(1.0)
    s0 = jnp.dot(x, w, precision=lax.Precision.HIGHEST) + b[0, 0]   # (N, 1)
    h = s0
    for _ in range(K):
        h = ALPHA * jnp.dot(adj, h, precision=lax.Precision.HIGHEST) + s0
    return h[:, 0]


if __name__ == "__main__":
    key = jax.random.PRNGKey(0)
    k_x, k_w, k_b, k_e = jax.random.split(key, 4)

    N, C, E = 32, 16, 64                          # nodes, in_channels, edges
    x = jax.random.normal(k_x, (N, C), jnp.float32)
    edge_index = jax.random.randint(k_e, (2, E), 0, N, dtype=jnp.int32)
    w = (jax.random.normal(k_w, (C, 1), jnp.float32)
         / jnp.sqrt(jnp.float32(C)))              # Linear(in_channels, 1) weight^T
    b = jax.random.normal(k_b, (1, 1), jnp.float32) * 0.1

    x_out, ei_out, ea_out, batch_out, perm = katz_pool_forward(
        x, edge_index, w, b, edge_attr=None, batch=None)
    jax.block_until_ready(x_out)
    jax.block_until_ready(ei_out)

    score_ref = _reference_score(x, edge_index, w, b)
    k = int(math.ceil(RATIO * N))
    TOL = dict(rtol=5e-2, atol=5e-2)

    # Pooled features match x[perm] * tanh(score_ref[perm]) at the selected nodes.
    assert x_out.shape == (k, C) and x_out.dtype == x.dtype
    x_expect = x[perm] * jnp.tanh(score_ref[perm])[:, None]
    assert jnp.allclose(x_out, x_expect, **TOL), "x_out mismatch"

    # perm is a valid top-k of the reference scores (robust to near-ties).
    assert perm.shape == (k,)
    assert int(jnp.unique(perm).size) == k
    assert int(perm.min()) >= 0 and int(perm.max()) < N
    sorted_ref = jnp.sort(score_ref)
    largest_excluded = sorted_ref[N - k - 1]
    assert float(jnp.min(score_ref[perm])) >= float(largest_excluded) - 5e-2, \
        "top-k selection mismatch"

    # Streaming (large-graph) Katz fallback agrees with the reference as well.
    x_out_s, _, _, _, perm_s = katz_pool_forward(
        x, edge_index, w, b, edge_attr=None, batch=None, force_stream=True)
    jax.block_until_ready(x_out_s)
    x_expect_s = x[perm_s] * jnp.tanh(score_ref[perm_s])[:, None]
    assert jnp.allclose(x_out_s, x_expect_s, **TOL), "streaming x_out mismatch"

    # Edge filtering stays inside the pooled node set.
    assert batch_out.shape == (k,)
    if ei_out.size:
        assert int(ei_out.min()) >= 0 and int(ei_out.max()) < k

    print("KERNEL_OK")
</pallas_src>

<mosaic_0001>
module attributes {stable_mosaic.version = 11 : i64} {
  func.func @_linear_kernel(%arg0: i32, %arg1: memref<1x128xf32, #tpu.memory_space<vmem>>, %arg2: memref<128x128xf32, #tpu.memory_space<vmem>>, %arg3: memref<1xf32, #tpu.memory_space<smem>>, %arg4: memref<1x128xf32, #tpu.memory_space<vmem>>) attributes {dimension_semantics = [#tpu.dimension_semantics<parallel>], iteration_bounds = array<i64: 1>, scalar_prefetch = 0 : i64, scratch_operands = 0 : i64, tpu.core_type = #tpu.core_type<tc>, window_params = [{pipeline_mode = #tpu.pipeline_mode<synchronous>, transform_indices = @transform_0, window_bounds = array<i64: 1, 128>}, {transform_indices = @transform_1, window_bounds = array<i64: 128, 128>}, {transform_indices = @transform_2, window_bounds = array<i64: 1>}, {transform_indices = @transform_3, window_bounds = array<i64: 1, 128>}]} {
    %c0 = arith.constant 0 : index
    %c0_0 = arith.constant 0 : index
    %0 = vector.load %arg1[%c0, %c0_0] : memref<1x128xf32, #tpu.memory_space<vmem>>, vector<1x128xf32>
    %c0_1 = arith.constant 0 : index
    %c0_2 = arith.constant 0 : index
    %1 = vector.load %arg2[%c0_1, %c0_2] : memref<128x128xf32, #tpu.memory_space<vmem>>, vector<128x128xf32>
    %cst = arith.constant dense<0.000000e+00> : vector<1x128xf32>
    %2 = tpu.matmul %0, %1, %cst {dimension_numbers = #tpu.dot_dimension_numbers<[1], [1], [0], [0], [0, 0, 1, 0], [], []>} : vector<1x128xf32>, vector<128x128xf32>, vector<1x128xf32> -> vector<1x128xf32>
    %c0_3 = arith.constant 0 : index
    %3 = memref.load %arg3[%c0_3] : memref<1xf32, #tpu.memory_space<smem>>
    %4 = vector.broadcast %3 : f32 to vector<1x128xf32>
    %5 = arith.addf %2, %4 : vector<1x128xf32>
    %c0_4 = arith.constant 0 : index
    %c0_5 = arith.constant 0 : index
    %6 = vector.load %arg4[%c0_4, %c0_5] : memref<1x128xf32, #tpu.memory_space<vmem>>, vector<1x128xf32>
    tpu.vector_store %arg4[%c0_4, %c0_5], %5 {strides = array<i32>} : memref<1x128xf32, #tpu.memory_space<vmem>>, vector<1x128xf32>,
    return
  }
  func.func @transform_0(%arg0: i32) -> (i32, i32) {
    %c0_i32 = arith.constant 0 : i32
    %c0_i32_0 = arith.constant 0 : i32
    %c0_i32_1 = arith.constant 0 : i32
    return %c0_i32, %c0_i32_0 : i32, i32
  }
  func.func @transform_1(%arg0: i32) -> (i32, i32) {
    %c0_i32 = arith.constant 0 : i32
    %c0_i32_0 = arith.constant 0 : i32
    return %arg0, %c0_i32 : i32, i32
  }
  func.func @transform_2(%arg0: i32) -> i32 {
    %c0_i32 = arith.constant 0 : i32
    %c0_i32_0 = arith.constant 0 : i32
    return %c0_i32 : i32
  }
  func.func @transform_3(%arg0: i32) -> (i32, i32) {
    %c0_i32 = arith.constant 0 : i32
    %c0_i32_0 = arith.constant 0 : i32
    return %c0_i32, %arg0 : i32, i32
  }
}

</mosaic_0001>

<llo_original>
// kernel: tpu_custom_call.1
$region0: #{tpu_custom_call.1}
  #allocation0 [shape = 'u32[]', space=smem, size = 0x4, offset = 0x4, fixed_abs, tag = 'smem constant byte address 0x4 - core index']
  #allocation1 [shape = 'u32[144,128]{1,0:T(1,128)}', space=vmem, size = 0x12000, scoped, tag = 'internal scratch']
  #allocation2 [shape = 'f32[1]{0:T(128)S(6)}', space=smem, size = 0x200, scoped, tag = 'scoped memory for tpu_custom_call.1']
  %s0 = inlined_call_operand.vmem [shape: f32[1,128], index: 0, kind: input, shape index: {}]
  %s1 = inlined_call_operand.hbm [shape: f32[128,128], index: 1, kind: input, shape index: {}]
  %s2 = inlined_call_operand.<no memory space> [shape: f32[1], index: 2, kind: input, shape index: {}]
  %s3 = inlined_call_operand.hbm [shape: f32[1,128], index: 3, kind: output, shape index: {}]
  %s4 = sld [smem:[#allocation0]]
  $region26: #{tpu_custom_call.1} parent=0
    _
  %s6 = ssub.s32 1, %s4
  %s7 = scalar_select 0, %s6, %s4
  %8 = sst [smem:[#allocation2]] %s2
  $region1: #{tpu_custom_call.1} parent=0
    #allocation3 [shape = 'u8[65536]{0}', space=vmem, size = 0x10000, scoped, tag = 'input window, operand 1, single buffered']
    #allocation4 [shape = 's32[1]{0}', space=sflag, size = 0x4, scoped, tag = 'scoped memory for tpu_custom_call.1']
    #allocation5 [shape = 's32[1]{0}', space=sflag, size = 0x4, scoped, tag = 'scoped memory for tpu_custom_call.1']
    #allocation6 [shape = 'u8[512]{0}', space=vmem, size = 0x400, scoped, tag = 'output window, operand 0, single buffered']
    %9 = vsyncpa [#allocation4], 0
    %10 = vsyncpa [#allocation5], 0
    // Predicated region
    $region2: #{tpu_custom_call.1} parent=1 // pred_check
      _
    $region3: #{tpu_custom_call.1} parent=1 // pred_check_branch
      %12 = sbr.rel (0) target = $region5
    $region4: #{tpu_custom_call.1} parent=1 // pred_region
      _
    $region5: #{tpu_custom_call.1} parent=1 // pred_fallthru
      _
    // Predicated region
    $region6: #{tpu_custom_call.1} parent=1 // pred_check
      _
    $region7: #{tpu_custom_call.1} parent=1 // pred_check_branch
      %14 = sbr.rel (0) target = $region9
    $region8: #{tpu_custom_call.1} parent=1 // pred_region
      %s16 = ssub.s32 2048, 2048
      %17 = vsyncadd [#allocation4], %s16
      %s18 = sshll.u32 [#allocation3], 4
      %s19 = int_to_ptr.vmem [resolvable:$true] %s18
      %24 = dma.hbm_to_vmem [thread:$0]  %s1, 2048, %s19, [#allocation4], 128, 128, 8
    $region9: #{tpu_custom_call.1} parent=1 // pred_fallthru
      _
    // Predicated region
    $region10: #{tpu_custom_call.1} parent=1 // pred_check
      _
    $region11: #{tpu_custom_call.1} parent=1 // pred_check_branch
      %26 = sbr.rel (0) target = $region13
    $region12: #{tpu_custom_call.1} parent=1 // pred_region
      _
    $region13: #{tpu_custom_call.1} parent=1 // pred_fallthru
      _
    // Predicated region
    $region14: #{tpu_custom_call.1} parent=1 // pred_check
      _
    $region15: #{tpu_custom_call.1} parent=1 // pred_check_branch
      %28 = sbr.rel (0) target = $region17
    $region16: #{tpu_custom_call.1} parent=1 // pred_region
      %29 = dma.done [#allocation4], 2048
    $region17: #{tpu_custom_call.1} parent=1 // pred_fallthru
      _
    %v30 = vld [vmem:[%s0] sm:$0x1]
    %v31 = vld [vmem:[#allocation3] sm:$0xff]
    %v32 = vld [vmem:[#allocation3 + $0x8] sm:$0xff]
    %v33 = vld [vmem:[#allocation3 + $0x10] sm:$0xff]
    %v34 = vld [vmem:[#allocation3 + $0x18] sm:$0xff]
    %v35 = vld [vmem:[#allocation3 + $0x20] sm:$0xff]
    %v36 = vld [vmem:[#allocation3 + $0x28] sm:$0xff]
    %v37 = vld [vmem:[#allocation3 + $0x30] sm:$0xff]
    %v38 = vld [vmem:[#allocation3 + $0x38] sm:$0xff]
    %v39 = vld [vmem:[#allocation3 + $0x40] sm:$0xff]
    %v40 = vld [vmem:[#allocation3 + $0x48] sm:$0xff]
    %v41 = vld [vmem:[#allocation3 + $0x50] sm:$0xff]
    %v42 = vld [vmem:[#allocation3 + $0x58] sm:$0xff]
    %v43 = vld [vmem:[#allocation3 + $0x60] sm:$0xff]
    %v44 = vld [vmem:[#allocation3 + $0x68] sm:$0xff]
    %v45 = vld [vmem:[#allocation3 + $0x70] sm:$0xff]
    %v46 = vld [vmem:[#allocation3 + $0x78] sm:$0xff]
    %s47 = sld [smem:[#allocation2]]
    %v48 = vstv %s47
    %49 = vmatprep.subr.mxu0 0.0
    %50 = vmatpush1.xpose.msra.mxu0 %v31
    %51 = vmatprep.subr.mxu0 0.0
    %52 = vmatpush1.xpose.msra.mxu0 %v32
    %53 = vmatprep.subr.mxu0 0.0
    %54 = vmatpush1.xpose.msra.mxu0 %v33
    %55 = vmatprep.subr.mxu0 0.0
    %56 = vmatpush1.xpose.msra.mxu0 %v34
    %57 = vmatprep.subr.mxu0 0.0
    %58 = vmatpush1.xpose.msra.mxu0 %v35
    %59 = vmatprep.subr.mxu0 0.0
    %60 = vmatpush1.xpose.msra.mxu0 %v36
    %61 = vmatprep.subr.mxu0 0.0
    %62 = vmatpush1.xpose.msra.mxu0 %v37
    %63 = vmatprep.subr.mxu0 0.0
    %64 = vmatpush1.xpose.msra.mxu0 %v38
    %65 = vmatprep.subr.mxu0 0.0
    %66 = vmatpush1.xpose.msra.mxu0 %v39
    %67 = vmatprep.subr.mxu0 0.0
    %68 = vmatpush1.xpose.msra.mxu0 %v40
    %69 = vmatprep.subr.mxu0 0.0
    %70 = vmatpush1.xpose.msra.mxu0 %v41
    %71 = vmatprep.subr.mxu0 0.0
    %72 = vmatpush1.xpose.msra.mxu0 %v42
    %73 = vmatprep.subr.mxu0 0.0
    %74 = vmatpush1.xpose.msra.mxu0 %v43
    %75 = vmatprep.subr.mxu0 0.0
    %76 = vmatpush1.xpose.msra.mxu0 %v44
    %77 = vmatprep.subr.mxu0 0.0
    %78 = vmatpush1.xpose.msra.mxu0 %v45
    %79 = vmatprep.subr.mxu0 0.0
    %80 = vmatpush1.xpose.msra.mxu0 %v46
    %81 = vmatprep.subr.mxu0 0.0
    %82 = vmatpush1.xpose.msra.mxu0 0.0
    %83 = vmatprep.subr.mxu0 0.0
    %84 = vmatpush1.xpose.msra.mxu0 0.0
    %85 = vmatprep.subr.mxu0 0.0
    %86 = vmatpush1.xpose.msra.mxu0 0.0
    %87 = vmatprep.subr.mxu0 0.0
    %88 = vmatpush1.xpose.msra.mxu0 0.0
    %89 = vmatprep.subr.mxu0 0.0
    %90 = vmatpush1.xpose.msra.mxu0 0.0
    %91 = vmatprep.subr.mxu0 0.0
    %92 = vmatpush1.xpose.msra.mxu0 0.0
    %93 = vmatprep.subr.mxu0 0.0
    %94 = vmatpush1.xpose.msra.mxu0 0.0
    %95 = vmatprep.subr.mxu0 0.0
    %96 = vmatpush1.xpose.msra.mxu0 0.0
    %97 = vmatprep.subr.mxu0 0.0
    %98 = vmatpush1.xpose.msra.mxu0 0.0
    %99 = vmatprep.subr.mxu0 0.0
    %100 = vmatpush1.xpose.msra.mxu0 0.0
    %101 = vmatprep.subr.mxu0 0.0
    %102 = vmatpush1.xpose.msra.mxu0 0.0
    %103 = vmatprep.subr.mxu0 0.0
    %104 = vmatpush1.xpose.msra.mxu0 0.0
    %105 = vmatprep.subr.mxu0 0.0
    %106 = vmatpush1.xpose.msra.mxu0 0.0
    %107 = vmatprep.subr.mxu0 0.0
    %108 = vmatpush1.xpose.msra.mxu0 0.0
    %109 = vmatprep.subr.mxu0 0.0
    %110 = vmatpush1.xpose.msra.mxu0 0.0
    %111 = vmatprep.subr.mxu0 0.0
    %112 = vmatpush1.xpose.msra.mxu0 0.0
    %113 = vmatprep.mubr.f32.mxu0 0.0
    %114 = vmatmul.mubr.f32.gmra.mrb[0].mxu0 %v30
    %v115 = vpop.f32.mrb[0].mxu0
    %v116 = vadd.f32 %v48, %v115
    %v117 = vpop.f32.mrb[0].mxu0
    %118 = vdwg.mxu0
    %119 = vst [vmem:[#allocation6] sm:$0x1] %v116
    // Predicated region
    $region18: #{tpu_custom_call.1} parent=1 // pred_check
      _
    $region19: #{tpu_custom_call.1} parent=1 // pred_check_branch
      %121 = sbr.rel (0) target = $region21
    $region20: #{tpu_custom_call.1} parent=1 // pred_region
      %s123 = ssub.s32 16, 16
      %124 = vsyncadd [#allocation5], %s123
      %s126 = sshll.u32 [#allocation6], 4
      %s127 = int_to_ptr.vmem [resolvable:$true] %s126
      %129 = dma.vmem_to_hbm [thread:$0]  %s127, 16, %s3, [#allocation5]
    $region21: #{tpu_custom_call.1} parent=1 // pred_fallthru
      _
    // Predicated region
    $region22: #{tpu_custom_call.1} parent=1 // pred_check
      _
    $region23: #{tpu_custom_call.1} parent=1 // pred_check_branch
      %131 = sbr.rel (0) target = $region25
    $region24: #{tpu_custom_call.1} parent=1 // pred_region
      %132 = dma.done [#allocation5], 16
    $region25: #{tpu_custom_call.1} parent=1 // pred_fallthru
      _
    %133 = vsyncpa [#allocation4], 1
    %134 = vsyncpa [#allocation5], 1

</llo_original>
